<compile_context>
chip_gen: v5e
topology: v5e:2x2
jax: 0.10.0
libtpu: 0.0.40
codegen_flags: <defaults>
</compile_context>

<pallas_src>
import jax
import jax.numpy as jnp
from jax.experimental import pallas as pl
from jax.experimental.pallas import tpu as pltpu

BN_EPS = 1e-5
_VMEM_LIMIT = 48 * 1024 * 1024  # above every default scoped limit, < v7x physical


def _round_up(x, m):
    return (x + m - 1) // m * m


# --------------------- pass 1: conv GEMM + BN batch statistics ---------------
def _conv_stats_kernel(p_ref, w_ref, y_ref, sum_ref, sumsq_ref):
    """p_ref: (tile_m, K) bf16 im2col rows; w_ref: (K, Cp) bf16 weights.

    y_ref:     (tile_m, Cp) f32 conv output tile (streamed out per grid step)
    sum_ref:   (1, Cp) f32 per-channel sum        (resident accumulator)
    sumsq_ref: (1, Cp) f32 per-channel sum of sq  (resident accumulator)
    """
    i = pl.program_id(0)
    acc = jnp.dot(p_ref[...], w_ref[...], preferred_element_type=jnp.float32)
    y_ref[...] = acc

    @pl.when(i == 0)
    def _():
        sum_ref[...] = jnp.zeros_like(sum_ref)
        sumsq_ref[...] = jnp.zeros_like(sumsq_ref)

    sum_ref[...] += jnp.sum(acc, axis=0, keepdims=True)
    sumsq_ref[...] += jnp.sum(acc * acc, axis=0, keepdims=True)


# --------------------- pass 2: BN apply (folded FMA) + ReLU ------------------
def _bn_relu_kernel(y_ref, scale_ref, shift_ref, o_ref):
    o_ref[...] = jnp.maximum(
        y_ref[...] * scale_ref[...] + shift_ref[...], 0.0
    ).astype(o_ref.dtype)


def down_conv(x_nchw, weight, gamma, beta, *, tile_m=512):
    """x_nchw: (N, C_in, H, W); weight: (C_out, C_in, 3, 3) (PyTorch OIHW)."""
    N, C_in, H, W = x_nchw.shape
    C_out = weight.shape[0]
    H_out = (H + 2 - 3) // 2 + 1
    W_out = (W + 2 - 3) // 2 + 1

    M = N * H_out * W_out
    K = 9 * C_in
    Cp = _round_up(C_out, 128)                 # lane-dense output / MXU columns
    tile_m = _round_up(min(tile_m, _round_up(M, 8)), 8)
    M_pad = _round_up(M, tile_m)
    num_m_tiles = M_pad // tile_m

    # --- glue: NCHW -> NHWC, pad, im2col (stride-2 3x3 windows), bf16 ---
    x = jnp.transpose(x_nchw, (0, 2, 3, 1)).astype(jnp.float32)      # (N,H,W,Ci)
    x_pad = jnp.pad(x, ((0, 0), (1, 1), (1, 1), (0, 0)))
    patches = jnp.stack(
        [jnp.stack(
            [x_pad[:, kh:kh + 2 * H_out:2, kw:kw + 2 * W_out:2, :] for kw in range(3)],
            axis=3)
         for kh in range(3)],
        axis=3,
    ).reshape(M, K)
    patches = jnp.pad(patches, ((0, M_pad - M), (0, 0))).astype(jnp.bfloat16)

    # weight (C_out, C_in, kh, kw) -> (kh, kw, C_in, C_out) -> (K, Cp) bf16
    w_mat = jnp.transpose(weight, (2, 3, 1, 0)).reshape(K, C_out)
    w_mat = jnp.pad(w_mat, ((0, 0), (0, Cp - C_out))).astype(jnp.bfloat16)

    # --- pass 1: conv + per-channel sum / sumsq (accumulated across M tiles) ---
    conv_flat, ch_sum, ch_sumsq = pl.pallas_call(
        _conv_stats_kernel,
        out_shape=(
            jax.ShapeDtypeStruct((M_pad, Cp), jnp.float32),
            jax.ShapeDtypeStruct((1, Cp), jnp.float32),
            jax.ShapeDtypeStruct((1, Cp), jnp.float32),
        ),
        grid_spec=pltpu.PrefetchScalarGridSpec(
            num_scalar_prefetch=0,
            grid=(num_m_tiles,),
            in_specs=[
                pl.BlockSpec((tile_m, K), lambda i: (i, 0)),
                pl.BlockSpec((K, Cp), lambda i: (0, 0)),
            ],
            out_specs=[
                pl.BlockSpec((tile_m, Cp), lambda i: (i, 0)),
                pl.BlockSpec((1, Cp), lambda i: (0, 0)),
                pl.BlockSpec((1, Cp), lambda i: (0, 0)),
            ],
        ),
        compiler_params=pltpu.CompilerParams(
            dimension_semantics=("arbitrary",),   # stats accumulate across tiles
            vmem_limit_bytes=_VMEM_LIMIT,
        ),
    )(patches, w_mat)

    # --- glue (O(C_out)): fold BN into a per-channel FMA. Zero-padded M rows
    # contribute 0 to sum/sumsq (conv has no bias), so divide by the true M. ---
    inv_m = 1.0 / float(M)
    mean = ch_sum * inv_m
    var = jnp.maximum(ch_sumsq * inv_m - mean * mean, 0.0)   # biased (train-mode) var
    gamma_p = jnp.pad(gamma.astype(jnp.float32), (0, Cp - C_out)).reshape(1, Cp)
    beta_p = jnp.pad(beta.astype(jnp.float32), (0, Cp - C_out)).reshape(1, Cp)
    scale = gamma_p * jax.lax.rsqrt(var + BN_EPS)
    shift = beta_p - mean * scale

    # --- pass 2: y = max(conv * scale + shift, 0), parallel over M tiles ---
    out_flat = pl.pallas_call(
        _bn_relu_kernel,
        out_shape=jax.ShapeDtypeStruct((M_pad, Cp), jnp.float32),
        grid_spec=pltpu.PrefetchScalarGridSpec(
            num_scalar_prefetch=0,
            grid=(num_m_tiles,),
            in_specs=[
                pl.BlockSpec((tile_m, Cp), lambda i: (i, 0)),
                pl.BlockSpec((1, Cp), lambda i: (0, 0)),
                pl.BlockSpec((1, Cp), lambda i: (0, 0)),
            ],
            out_specs=pl.BlockSpec((tile_m, Cp), lambda i: (i, 0)),
        ),
        compiler_params=pltpu.CompilerParams(
            dimension_semantics=("parallel",),    # megacore on v7x
            vmem_limit_bytes=_VMEM_LIMIT,
        ),
    )(conv_flat, scale, shift)

    # --- glue: drop padding, back to NCHW ---
    out = out_flat[:M, :C_out].reshape(N, H_out, W_out, C_out)
    return jnp.transpose(out, (0, 3, 1, 2))


def _reference(x_nchw, weight, gamma, beta):
    """Pure-JAX forward matching the PyTorch module (train-mode BN)."""
    y = jax.lax.conv_general_dilated(
        x_nchw.astype(jnp.float32), weight.astype(jnp.float32),
        window_strides=(2, 2), padding=((1, 1), (1, 1)),
        dimension_numbers=("NCHW", "OIHW", "NCHW"),
        precision=jax.lax.Precision.HIGHEST,
    )
    mean = jnp.mean(y, axis=(0, 2, 3), keepdims=True)
    var = jnp.mean(jnp.square(y - mean), axis=(0, 2, 3), keepdims=True)
    yn = (y - mean) * jax.lax.rsqrt(var + BN_EPS)
    yn = yn * gamma.reshape(1, -1, 1, 1) + beta.reshape(1, -1, 1, 1)
    return jnp.maximum(yn, 0.0)


if __name__ == "__main__":
    key = jax.random.PRNGKey(0)
    kx, kw = jax.random.split(key)

    N, C_in, H, W = 2, 4, 16, 16
    C_out = 8

    x = jax.random.normal(kx, (N, C_in, H, W), dtype=jnp.float32)
    fan_in = C_in * 3 * 3
    weight = jax.random.normal(kw, (C_out, C_in, 3, 3), dtype=jnp.float32) * (fan_in ** -0.5)
    gamma = jnp.ones((C_out,), dtype=jnp.float32)   # BatchNorm2d default init
    beta = jnp.zeros((C_out,), dtype=jnp.float32)

    # tile_m=64 forces a 2-step grid at this toy size (M = 2*8*8 = 128) so the
    # cross-tile BN-stats accumulation path is actually exercised.
    out = jax.block_until_ready(down_conv(x, weight, gamma, beta, tile_m=64))
    assert out.shape == (N, C_out, H // 2, W // 2), out.shape

    # Tight check vs. a reference that applies the same bf16 operand rounding
    # the kernel's MXU path uses (f32 accumulation both ways).
    ref_bf16 = jax.block_until_ready(_reference(
        x.astype(jnp.bfloat16).astype(jnp.float32),
        weight.astype(jnp.bfloat16).astype(jnp.float32), gamma, beta))
    err_tight = float(jnp.max(jnp.abs(out - ref_bf16)))
    assert jnp.allclose(out, ref_bf16, atol=1e-3, rtol=1e-3), err_tight

    # Loose check vs. the full-f32 PyTorch-equivalent forward (bf16 MXU operands
    # introduce ~1e-2-scale error on the unit-variance normalized output).
    ref_f32 = jax.block_until_ready(_reference(x, weight, gamma, beta))
    err_loose = float(jnp.max(jnp.abs(out - ref_f32)))
    assert jnp.allclose(out, ref_f32, atol=5e-2, rtol=5e-2), err_loose

    print("KERNEL_OK")
</pallas_src>

<mosaic_0001>
module attributes {stable_mosaic.version = 11 : i64} {
  func.func @_conv_stats_kernel(%arg0: i32, %arg1: memref<64x36xbf16, #tpu.memory_space<vmem>>, %arg2: memref<36x128xbf16, #tpu.memory_space<vmem>>, %arg3: memref<64x128xf32, #tpu.memory_space<vmem>>, %arg4: memref<1x128xf32, #tpu.memory_space<vmem>>, %arg5: memref<1x128xf32, #tpu.memory_space<vmem>>) attributes {dimension_semantics = [#tpu.dimension_semantics<arbitrary>], iteration_bounds = array<i64: 2>, scalar_prefetch = 0 : i64, scratch_operands = 0 : i64, tpu.core_type = #tpu.core_type<tc>, window_params = [{transform_indices = @transform_0, window_bounds = array<i64: 64, 36>}, {pipeline_mode = #tpu.pipeline_mode<synchronous>, transform_indices = @transform_1, window_bounds = array<i64: 36, 128>}, {transform_indices = @transform_2, window_bounds = array<i64: 64, 128>}, {pipeline_mode = #tpu.pipeline_mode<synchronous>, transform_indices = @transform_3, window_bounds = array<i64: 1, 128>}, {pipeline_mode = #tpu.pipeline_mode<synchronous>, transform_indices = @transform_4, window_bounds = array<i64: 1, 128>}]} {
    %c0 = arith.constant 0 : index
    %c0_0 = arith.constant 0 : index
    %0 = vector.load %arg1[%c0, %c0_0] : memref<64x36xbf16, #tpu.memory_space<vmem>>, vector<64x36xbf16>
    %c0_1 = arith.constant 0 : index
    %c0_2 = arith.constant 0 : index
    %1 = vector.load %arg2[%c0_1, %c0_2] : memref<36x128xbf16, #tpu.memory_space<vmem>>, vector<36x128xbf16>
    %cst = arith.constant dense<0.000000e+00> : vector<64x128xf32>
    %2 = tpu.matmul %0, %1, %cst {dimension_numbers = #tpu.dot_dimension_numbers<[1], [0], [0], [1], [0, 0, 1, 1], [], []>} : vector<64x36xbf16>, vector<36x128xbf16>, vector<64x128xf32> -> vector<64x128xf32>
    %c0_3 = arith.constant 0 : index
    %c0_4 = arith.constant 0 : index
    %3 = vector.load %arg3[%c0_3, %c0_4] : memref<64x128xf32, #tpu.memory_space<vmem>>, vector<64x128xf32>
    tpu.vector_store %arg3[%c0_3, %c0_4], %2 {strides = array<i32>} : memref<64x128xf32, #tpu.memory_space<vmem>>, vector<64x128xf32>,
    %c0_i32 = arith.constant 0 : i32
    %4 = arith.cmpi eq, %arg0, %c0_i32 : i32
    %5 = arith.extui %4 : i1 to i32
    %c0_i32_5 = arith.constant 0 : i32
    %6 = arith.cmpi ne, %5, %c0_i32_5 : i32
    scf.if %6 {
      %cst_16 = arith.constant 0.000000e+00 : f32
      %18 = vector.broadcast %cst_16 : f32 to vector<1x128xf32>
      %c0_17 = arith.constant 0 : index
      %c0_18 = arith.constant 0 : index
      %19 = vector.load %arg4[%c0_17, %c0_18] : memref<1x128xf32, #tpu.memory_space<vmem>>, vector<1x128xf32>
      tpu.vector_store %arg4[%c0_17, %c0_18], %18 {strides = array<i32>} : memref<1x128xf32, #tpu.memory_space<vmem>>, vector<1x128xf32>,
      %cst_19 = arith.constant 0.000000e+00 : f32
      %20 = vector.broadcast %cst_19 : f32 to vector<1x128xf32>
      %c0_20 = arith.constant 0 : index
      %c0_21 = arith.constant 0 : index
      %21 = vector.load %arg5[%c0_20, %c0_21] : memref<1x128xf32, #tpu.memory_space<vmem>>, vector<1x128xf32>
      tpu.vector_store %arg5[%c0_20, %c0_21], %20 {strides = array<i32>} : memref<1x128xf32, #tpu.memory_space<vmem>>, vector<1x128xf32>,
    } else {
    }
    %c0_6 = arith.constant 0 : index
    %c0_7 = arith.constant 0 : index
    %7 = vector.load %arg4[%c0_6, %c0_7] : memref<1x128xf32, #tpu.memory_space<vmem>>, vector<1x128xf32>
    %cst_8 = arith.constant dense<0.000000e+00> : vector<128xf32>
    %8 = vector.multi_reduction <add>, %2, %cst_8 [0] : vector<64x128xf32> to vector<128xf32>
    %9 = vector.shape_cast %8 : vector<128xf32> to vector<1x128xf32>
    %10 = arith.addf %7, %9 : vector<1x128xf32>
    %c0_9 = arith.constant 0 : index
    %c0_10 = arith.constant 0 : index
    %11 = vector.load %arg4[%c0_9, %c0_10] : memref<1x128xf32, #tpu.memory_space<vmem>>, vector<1x128xf32>
    tpu.vector_store %arg4[%c0_9, %c0_10], %10 {strides = array<i32>} : memref<1x128xf32, #tpu.memory_space<vmem>>, vector<1x128xf32>,
    %c0_11 = arith.constant 0 : index
    %c0_12 = arith.constant 0 : index
    %12 = vector.load %arg5[%c0_11, %c0_12] : memref<1x128xf32, #tpu.memory_space<vmem>>, vector<1x128xf32>
    %13 = arith.mulf %2, %2 : vector<64x128xf32>
    %cst_13 = arith.constant dense<0.000000e+00> : vector<128xf32>
    %14 = vector.multi_reduction <add>, %13, %cst_13 [0] : vector<64x128xf32> to vector<128xf32>
    %15 = vector.shape_cast %14 : vector<128xf32> to vector<1x128xf32>
    %16 = arith.addf %12, %15 : vector<1x128xf32>
    %c0_14 = arith.constant 0 : index
    %c0_15 = arith.constant 0 : index
    %17 = vector.load %arg5[%c0_14, %c0_15] : memref<1x128xf32, #tpu.memory_space<vmem>>, vector<1x128xf32>
    tpu.vector_store %arg5[%c0_14, %c0_15], %16 {strides = array<i32>} : memref<1x128xf32, #tpu.memory_space<vmem>>, vector<1x128xf32>,
    return
  }
  func.func @transform_0(%arg0: i32) -> (i32, i32) {
    %c0_i32 = arith.constant 0 : i32
    %c0_i32_0 = arith.constant 0 : i32
    return %arg0, %c0_i32 : i32, i32
  }
  func.func @transform_1(%arg0: i32) -> (i32, i32) {
    %c0_i32 = arith.constant 0 : i32
    %c0_i32_0 = arith.constant 0 : i32
    %c0_i32_1 = arith.constant 0 : i32
    return %c0_i32, %c0_i32_0 : i32, i32
  }
  func.func @transform_2(%arg0: i32) -> (i32, i32) {
    %c0_i32 = arith.constant 0 : i32
    %c0_i32_0 = arith.constant 0 : i32
    return %arg0, %c0_i32 : i32, i32
  }
  func.func @transform_3(%arg0: i32) -> (i32, i32) {
    %c0_i32 = arith.constant 0 : i32
    %c0_i32_0 = arith.constant 0 : i32
    %c0_i32_1 = arith.constant 0 : i32
    return %c0_i32, %c0_i32_0 : i32, i32
  }
  func.func @transform_4(%arg0: i32) -> (i32, i32) {
    %c0_i32 = arith.constant 0 : i32
    %c0_i32_0 = arith.constant 0 : i32
    %c0_i32_1 = arith.constant 0 : i32
    return %c0_i32, %c0_i32_0 : i32, i32
  }
}

</mosaic_0001>

<llo_original>
// kernel: tpu_custom_call.1
$region0: #{tpu_custom_call.1}
  #allocation0 [shape = 'u32[]', space=smem, size = 0x4, offset = 0x4, fixed_abs, tag = 'smem constant byte address 0x4 - core index']
  #allocation1 [shape = 'u32[72,128]{1,0:T(1,128)}', space=vmem, size = 0x9000, scoped, tag = 'internal scratch']
  %s0 = inlined_call_operand.vmem [shape: bf16[128,36], index: 0, kind: input, shape index: {}]
  %s1 = inlined_call_operand.vmem [shape: bf16[36,128], index: 1, kind: input, shape index: {}]
  %s2 = inlined_call_operand.hbm [shape: f32[128,128], index: 2, kind: output, shape index: {0}]
  %s3 = inlined_call_operand.hbm [shape: f32[1,128], index: 3, kind: output, shape index: {1}]
  %s4 = inlined_call_operand.hbm [shape: f32[1,128], index: 4, kind: output, shape index: {2}]
  %5 = xla_tuple %s2, %s3, %s4
  %s6 = sld [smem:[#allocation0]]
  $region61: #{tpu_custom_call.1} parent=0
    _
  %s8 = ssub.s32 1, %s6
  %s9 = scalar_select 0, %s8, %s6
  $region1: #{tpu_custom_call.1} parent=0
    #allocation2 [shape = 'u8[65536]{0}', space=vmem, size = 0x10000, scoped, tag = 'output window, operand 0']
    #allocation3 [shape = 's32[2]{0}', space=sflag, size = 0x8, scoped, tag = 'scoped memory for tpu_custom_call.1']
    #allocation4 [shape = 'u8[512]{0}', space=vmem, size = 0x400, scoped, tag = 'output window, operand 1, single buffered']
    #allocation5 [shape = 's32[1]{0}', space=sflag, size = 0x4, scoped, tag = 'scoped memory for tpu_custom_call.1']
    #allocation6 [shape = 'u8[512]{0}', space=vmem, size = 0x400, scoped, tag = 'output window, operand 2, single buffered']
    %10 = vsyncpa [#allocation3], 0
    %s11 = scalar_lea.sflag [#allocation3], 1
    %12 = vsyncpa %s11, 0
    %13 = vsyncpa [#allocation5], 0
    loop: start=0, step=1, limit=4
    $region2: #{tpu_custom_call.1} parent=1 // loop_pre_header
      _
    $region3: #{tpu_custom_call.1} parent=1 // loop_header
      %s15 = sphi 0, %s19
      %p16 = scmp.ge.s32.totalorder %s15, 4
      %s25 = sphi 0, %s27
      %s28 = sphi 0, %s25
      %s29 = sphi 0, %s28
      %s45 = sphi 0, %s29
      %s49 = sphi 0, %s49
      %s51 = sphi 0, %s49
      %s52 = sphi 0, %s51
      %s66 = sphi 0, %s52
      %s72 = sphi 0, %s74
      %s75 = sphi 0, %s72
      %s76 = sphi 0, %s75
      %s92 = sphi 0, %s76
      %s96 = sphi 0, %s96
      %s98 = sphi 0, %s96
      %s99 = sphi 0, %s98
      %s113 = sphi 0, %s99
      %s117 = sphi 0, %s117
      %s119 = sphi 0, %s117
      %s120 = sphi 0, %s119
      %s134 = sphi 0, %s120
    $region4: #{tpu_custom_call.1} parent=1 // loop_header_branch
      %18 = sbr.rel (%p16) target = $region8
    $region5: #{tpu_custom_call.1} parent=1 // loop_body
      %s20 = ssub.s32 %s15, 1
      %s21 = ssub.s32 %s15, 2
      %s22 = sadd.s32 %s15, 1
      %s23 = ssub.s32 %s15, %s22
      %p24 = scmp.eq.s32.totalorder %s23, 0
      %s26 = sadd.s32 %s25, 1
      %s27 = scalar_select %p24, %s25, %s26
      %p30 = pneg %p24
      %p31 = scmp.eq.s32.totalorder %s15, 1
      %p32 = por %p30, %p31
      %p33 = scmp.ne.s32.totalorder %s25, %s28
      %p34 = scmp.eq.s32.totalorder %s15, 0
      %p35 = por %p33, %p34
      %p36 = scmp.ne.s32.totalorder %s25, %s28
      %p37 = scmp.eq.s32.totalorder %s20, 1
      %p38 = por %p36, %p37
      %p39 = scmp.ne.s32.totalorder %s28, %s29
      %p40 = scmp.eq.s32.totalorder %s20, 0
      %p41 = por %p39, %p40
      %p42 = scmp.ne.s32.totalorder %s28, %s29
      %p43 = scmp.eq.s32.totalorder %s21, 1
      %p44 = por %p42, %p43
      %p46 = scmp.ne.s32.totalorder %s29, %s45
      %p47 = scmp.eq.s32.totalorder %s21, 0
      %p48 = por %p46, %p47
      %s50 = sadd.s32 %s49, 1
      %p53 = scmp.eq.s32.totalorder %s15, 1
      %p54 = scmp.ne.s32.totalorder %s49, %s51
      %p55 = scmp.eq.s32.totalorder %s15, 0
      %p56 = por %p54, %p55
      %p57 = scmp.ne.s32.totalorder %s49, %s51
      %p58 = scmp.eq.s32.totalorder %s20, 1
      %p59 = por %p57, %p58
      %p60 = scmp.ne.s32.totalorder %s51, %s52
      %p61 = scmp.eq.s32.totalorder %s20, 0
      %p62 = por %p60, %p61
      %p63 = scmp.ne.s32.totalorder %s51, %s52
      %p64 = scmp.eq.s32.totalorder %s21, 1
      %p65 = por %p63, %p64
      %p67 = scmp.ne.s32.totalorder %s52, %s66
      %p68 = scmp.eq.s32.totalorder %s21, 0
      %p69 = por %p67, %p68
      %s70 = ssub.s32 %s15, %s22
      %p71 = scmp.eq.s32.totalorder %s70, 0
      %s73 = sadd.s32 %s72, 1
      %s74 = scalar_select %p71, %s72, %s73
      %p77 = pneg %p71
      %p78 = scmp.eq.s32.totalorder %s15, 1
      %p79 = por %p77, %p78
      %p80 = scmp.ne.s32.totalorder %s72, %s75
      %p81 = scmp.eq.s32.totalorder %s15, 0
      %p82 = por %p80, %p81
      %p83 = scmp.ne.s32.totalorder %s72, %s75
      %p84 = scmp.eq.s32.totalorder %s20, 1
      %p85 = por %p83, %p84
      %p86 = scmp.ne.s32.totalorder %s75, %s76
      %p87 = scmp.eq.s32.totalorder %s20, 0
      %p88 = por %p86, %p87
      %p89 = scmp.ne.s32.totalorder %s75, %s76
      %p90 = scmp.eq.s32.totalorder %s21, 1
      %p91 = por %p89, %p90
      %p93 = scmp.ne.s32.totalorder %s76, %s92
      %p94 = scmp.eq.s32.totalorder %s21, 0
      %p95 = por %p93, %p94
      %s97 = sadd.s32 %s96, 1
      %p100 = scmp.eq.s32.totalorder %s15, 1
      %p101 = scmp.ne.s32.totalorder %s96, %s98
      %p102 = scmp.eq.s32.totalorder %s15, 0
      %p103 = por %p101, %p102
      %p104 = scmp.ne.s32.totalorder %s96, %s98
      %p105 = scmp.eq.s32.totalorder %s20, 1
      %p106 = por %p104, %p105
      %p107 = scmp.ne.s32.totalorder %s98, %s99
      %p108 = scmp.eq.s32.totalorder %s20, 0
      %p109 = por %p107, %p108
      %p110 = scmp.ne.s32.totalorder %s98, %s99
      %p111 = scmp.eq.s32.totalorder %s21, 1
      %p112 = por %p110, %p111
      %p114 = scmp.ne.s32.totalorder %s99, %s113
      %p115 = scmp.eq.s32.totalorder %s21, 0
      %p116 = por %p114, %p115
      %s118 = sadd.s32 %s117, 1
      %p121 = scmp.eq.s32.totalorder %s15, 1
      %p122 = scmp.ne.s32.totalorder %s117, %s119
      %p123 = scmp.eq.s32.totalorder %s15, 0
      %p124 = por %p122, %p123
      %p125 = scmp.ne.s32.totalorder %s117, %s119
      %p126 = scmp.eq.s32.totalorder %s20, 1
      %p127 = por %p125, %p126
      %p128 = scmp.ne.s32.totalorder %s119, %s120
      %p129 = scmp.eq.s32.totalorder %s20, 0
      %p130 = por %p128, %p129
      %p131 = scmp.ne.s32.totalorder %s119, %s120
      %p132 = scmp.eq.s32.totalorder %s21, 1
      %p133 = por %p131, %p132
      %p135 = scmp.ne.s32.totalorder %s120, %s134
      %p136 = scmp.eq.s32.totalorder %s21, 0
      %p137 = por %p135, %p136
      %p138 = scmp.le.s32.totalorder 1, %s15
      %p139 = scmp.lt.s32.totalorder %s15, 3
      %p140 = pnand %p138, %p139
      %p141 = pneg %p140
      // Predicated region
      $region9: #{tpu_custom_call.1} parent=5 // pred_check
        _
      $region10: #{tpu_custom_call.1} parent=5 // pred_check_branch
        %143 = sbr.rel (%p140) target = $region12
      $region11: #{tpu_custom_call.1} parent=5 // pred_region
        %s144 = ssub.s32 %s15, 1
        // Predicated region
        $region13: #{tpu_custom_call.1} parent=11 // pred_check
          %p145 = pneg %p62
        $region14: #{tpu_custom_call.1} parent=11 // pred_check_branch
          %147 = sbr.rel (%p145) target = $region16
        $region15: #{tpu_custom_call.1} parent=11 // pred_region
          _
        $region16: #{tpu_custom_call.1} parent=11 // pred_fallthru
          _
      $region12: #{tpu_custom_call.1} parent=5 // pred_fallthru
        _
      %p148 = scmp.lt.s32.totalorder %s15, 2
      // Predicated region
      $region17: #{tpu_custom_call.1} parent=5 // pred_check
        %p149 = pneg %p148
      $region18: #{tpu_custom_call.1} parent=5 // pred_check_branch
        %151 = sbr.rel (%p149) target = $region20
      $region19: #{tpu_custom_call.1} parent=5 // pred_region
        // Predicated region
        $region21: #{tpu_custom_call.1} parent=19 // pred_check
          %p152 = pneg %p35
        $region22: #{tpu_custom_call.1} parent=19 // pred_check_branch
          %154 = sbr.rel (%p152) target = $region24
        $region23: #{tpu_custom_call.1} parent=19 // pred_region
          %s155 = smul.u32 8, %s15
          %p156 = scmp.lt.s32.totalorder %s155, 15
          %s157 = scalar_select %p156, %s155, 15
          %s158 = smul.addr %s157, 4
          %s159 = scalar_lea.vmem %s0, %s158
          %s160 = smul.u32 8, %s15
        $region24: #{tpu_custom_call.1} parent=19 // pred_fallthru
          _
      $region20: #{tpu_custom_call.1} parent=5 // pred_fallthru
        _
      %p161 = scmp.le.s32.totalorder 1, %s15
      %p162 = scmp.lt.s32.totalorder %s15, 3
      %p163 = pnand %p161, %p162
      %p164 = pneg %p163
      // Predicated region
      $region25: #{tpu_custom_call.1} parent=5 // pred_check
        _
      $region26: #{tpu_custom_call.1} parent=5 // pred_check_branch
        %166 = sbr.rel (%p163) target = $region28
      $region27: #{tpu_custom_call.1} parent=5 // pred_region
        %s167 = ssub.s32 %s15, 1
        %s168 = smul.u32 8, %s20
        %p169 = scmp.lt.s32.totalorder %s168, 15
        %s170 = scalar_select %p169, %s168, 15
        %s171 = smul.addr %s170, 4
        %s172 = scalar_lea.vmem %s0, %s171
        %p173 = pneg %p41
        %p174 = pneg %p38
        %p175 = pneg %p62
        %p176 = pneg %p59
        %p177 = pneg %p88
        %p178 = pneg %p85
        %s179 = sand.u32 %s75, 1
        %s180 = scalar_lea.sflag [#allocation3], %s179
        %s181 = sand.u32 %s75, 1
        %s182 = smul.addr %s181, 64
        %s183 = scalar_lea.vmem [#allocation2], %s182
        %p184 = pneg %p109
        %p185 = pneg %p106
        %p186 = pneg %p130
        %p187 = pneg %p127
        %s188 = smul.u32 8, %s20
        %p189 = scmp.lt.s32.totalorder %s188, 15
        %s190 = scalar_select %p189, %s188, 15
        %s191 = smul.addr %s190, 4
        %s192 = scalar_lea.vmem %s0, %s191
        %s193 = smul.u32 8, %s20
        %s194 = smul.u32 8, %s20
        %v196 = vld [vmem:[%s192] sm:$0xf]
        %v197 = vld [vmem:[%s192 + $0x4] sm:$0xf]
        %v198 = vld [vmem:[%s192 + $0x8] sm:$0xf]
        %v199 = vld [vmem:[%s192 + $0xc] sm:$0xf]
        %v200 = vld [vmem:[%s192 + $0x10] sm:$0xf]
        %v201 = vld [vmem:[%s192 + $0x14] sm:$0xf]
        %v202 = vld [vmem:[%s192 + $0x18] sm:$0xf]
        %v203 = vld [vmem:[%s192 + $0x1c] sm:$0xf]
        %v204 = vld [vmem:[%s1] sm:$0xf]
        %v205 = vld [vmem:[%s1 + $0x4] sm:$0xf]
        %v206 = vld [vmem:[%s1 + $0x8] sm:$0xf]
        %v207 = vld [vmem:[%s1 + $0xc] sm:$0xf]
        %v208 = vld [vmem:[%s1 + $0x10] sm:$0x3]
        %v217 = vunpack.c.l.b16 %v196
        %v218 = vunpack.c.l.b16 %v197
        %v219 = vunpack.c.l.b16 %v198
        %v220 = vunpack.c.l.b16 %v199
        %v221 = vunpack.c.l.b16 %v200
        %v222 = vunpack.c.l.b16 %v201
        %v223 = vunpack.c.l.b16 %v202
        %v224 = vunpack.c.l.b16 %v203
        %v225 = vpack.c.b16 %v218, %v217
        %v226 = vpack.c.b16 %v220, %v219
        %v227 = vpack.c.b16 %v222, %v221
        %v228 = vpack.c.b16 %v224, %v223
        %v234 = vunpack.c.l.b16 %v204
        %v235 = vunpack.c.l.b16 %v205
        %v236 = vunpack.c.l.b16 %v206
        %v237 = vunpack.c.l.b16 %v207
        %v238 = vunpack.c.l.b16 %v208
        %v239 = vpack.c.b16 %v235, %v234
        %v240 = vpack.c.b16 %v237, %v236
        %v241 = vpack.c.b16 %v238, %v238
        %vm244 = vcmask 293888
        %v246 = vsel %vm244, %v225, 0
        %v249 = vsel %vm244, %v226, 0
        %v252 = vsel %vm244, %v227, 0
        %v255 = vsel %vm244, %v228, 0
        %vm257 = vcmask 1041408
        %v259 = vsel %vm257, %v241, 0
        %261 = vmatpush.bf16.msra.mxu0 0
        %262 = vmatpush.bf16.msra.mxu0 0
        %263 = vmatpush.bf16.msra.mxu0 0
        %264 = vmatpush.bf16.msra.mxu0 0
        %265 = vmatpush.bf16.msra.mxu0 0
        %266 = vmatpush.bf16.msra.mxu0 %v259
        %267 = vmatpush.bf16.msra.mxu0 %v240
        %268 = vmatpush.bf16.msra.mxu0 %v239
        %269 = vmatmul.bf16.gmra.mxu0 %v246
        %v270 = vpop.f32.mrf.mxu0
        %v271 = vadd.f32 0.0, %v270
        %v272 = vpop.f32.mrf.mxu0
        %v273 = vadd.f32 0.0, %v272
        %274 = vmatmul.bf16.gmra.mxu0 %v249
        %v275 = vpop.f32.mrf.mxu0
        %v276 = vadd.f32 0.0, %v275
        %v277 = vpop.f32.mrf.mxu0
        %v278 = vadd.f32 0.0, %v277
        %279 = vmatmul.bf16.gmra.mxu0 %v252
        %v280 = vpop.f32.mrf.mxu0
        %v281 = vadd.f32 0.0, %v280
        %v282 = vpop.f32.mrf.mxu0
        %v283 = vadd.f32 0.0, %v282
        %284 = vmatmul.bf16.gmra.mxu0 %v255
        %v285 = vpop.f32.mrf.mxu0
        %v286 = vadd.f32 0.0, %v285
        %v287 = vpop.f32.mrf.mxu0
        %v288 = vadd.f32 0.0, %v287
        %289 = vdwg.mxu0
        %290 = vst [vmem:[%s183] sm:$0xff] %v271
        %291 = vst [vmem:[%s183 + $0x8] sm:$0xff] %v273
        %292 = vst [vmem:[%s183 + $0x10] sm:$0xff] %v276
        %293 = vst [vmem:[%s183 + $0x18] sm:$0xff] %v278
        %294 = vst [vmem:[%s183 + $0x20] sm:$0xff] %v281
        %295 = vst [vmem:[%s183 + $0x28] sm:$0xff] %v283
        %296 = vst [vmem:[%s183 + $0x30] sm:$0xff] %v286
        %297 = vst [vmem:[%s183 + $0x38] sm:$0xff] %v288
        %p298 = scmp.eq.s32.totalorder %s20, 0
        // Predicated region
        $region29: #{tpu_custom_call.1} parent=27 // pred_check
          %p299 = pneg %p298
        $region30: #{tpu_custom_call.1} parent=27 // pred_check_branch
          %301 = sbr.rel (%p299) target = $region32
        $region31: #{tpu_custom_call.1} parent=27 // pred_region
          %302 = vst [vmem:[#allocation4] sm:$0x1] 0.0
          %303 = vst [vmem:[#allocation6] sm:$0x1] 0.0
        $region32: #{tpu_custom_call.1} parent=27 // pred_fallthru
          _
        %v304 = vld [vmem:[#allocation4] sm:$0x1]
        %v305 = vadd.f32 %v271, %v273
        %v306 = vadd.f32 %v305, %v276
        %v307 = vadd.f32 %v306, %v278
        %v308 = vadd.f32 %v307, %v281
        %v309 = vadd.f32 %v308, %v283
        %v310 = vadd.f32 %v309, %v286
        %v311 = vadd.f32 %v310, %v288
        %v312 = vrot.slane %v311, 4
        %v313 = vadd.f32 %v311, %v312
        %v314 = vrot.slane %v313, 2
        %v315 = vadd.f32 %v313, %v314
        %v316 = vrot.slane %v315, 1
        %v317 = vadd.f32 %v315, %v316
        %v318 = vadd.f32 %v304, %v317
        %319 = vst [vmem:[#allocation4] sm:$0x1] %v318
        %v320 = vld [vmem:[#allocation6] sm:$0x1]
        %v321 = vmul.f32 %v271, %v271
        %v322 = vmul.f32 %v273, %v273
        %v323 = vmul.f32 %v276, %v276
        %v324 = vmul.f32 %v278, %v278
        %v325 = vmul.f32 %v281, %v281
        %v326 = vmul.f32 %v283, %v283
        %v327 = vmul.f32 %v286, %v286
        %v328 = vmul.f32 %v288, %v288
        %v329 = vadd.f32 %v321, %v322
        %v330 = vadd.f32 %v329, %v323
        %v331 = vadd.f32 %v330, %v324
        %v332 = vadd.f32 %v331, %v325
        %v333 = vadd.f32 %v332, %v326
        %v334 = vadd.f32 %v333, %v327
        %v335 = vadd.f32 %v334, %v328
        %v336 = vrot.slane %v335, 4
        %v337 = vadd.f32 %v335, %v336
        %v338 = vrot.slane %v337, 2
        %v339 = vadd.f32 %v337, %v338
        %v340 = vrot.slane %v339, 1
        %v341 = vadd.f32 %v339, %v340
        %v342 = vadd.f32 %v320, %v341
        %343 = vst [vmem:[#allocation6] sm:$0x1] %v342
        %s344 = sand.u32 %s75, 1
        %s345 = scalar_lea.sflag [#allocation3], %s344
        %s346 = sand.u32 %s75, 1
        %s347 = smul.addr %s346, 64
        %s348 = scalar_lea.vmem [#allocation2], %s347
        // Predicated region
        $region33: #{tpu_custom_call.1} parent=27 // pred_check
          %p349 = pneg %p85
        $region34: #{tpu_custom_call.1} parent=27 // pred_check_branch
          %351 = sbr.rel (%p349) target = $region36
        $region35: #{tpu_custom_call.1} parent=27 // pred_region
          %s352 = smul.u32 8, %s20
          %354 = vsyncadd %s345, 0
          %s355 = smul.addr %s352, 8
          %s356 = scalar_lea.hbm %s2, %s355
          %s357 = sshll.u32 %s348, 4
          %s358 = int_to_ptr.vmem [resolvable:$true] %s357
          %s359 = sshll.u32 %s356, 4
          %s360 = int_to_ptr.hbm [resolvable:$true] %s359
          %365 = dma.vmem_to_hbm [thread:$0]  %s358, 1024, %s360, %s345, 128, 128, 8
        $region36: #{tpu_custom_call.1} parent=27 // pred_fallthru
          _
        // Predicated region
        $region37: #{tpu_custom_call.1} parent=27 // pred_check
          %p366 = pneg %p106
        $region38: #{tpu_custom_call.1} parent=27 // pred_check_branch
          %368 = sbr.rel (%p366) target = $region40
        $region39: #{tpu_custom_call.1} parent=27 // pred_region
          %370 = vsyncadd [#allocation5], 0
          %s372 = sshll.u32 [#allocation4], 4
          %s373 = int_to_ptr.vmem [resolvable:$true] %s372
          %s374 = sshll.u32 %s3, 4
          %s375 = int_to_ptr.hbm [resolvable:$true] %s374
          %377 = dma.vmem_to_hbm [thread:$0]  %s373, 16, %s375, [#allocation5]
        $region40: #{tpu_custom_call.1} parent=27 // pred_fallthru
          _
        // Predicated region
        $region41: #{tpu_custom_call.1} parent=27 // pred_check
          %p378 = pneg %p127
        $region42: #{tpu_custom_call.1} parent=27 // pred_check_branch
          %380 = sbr.rel (%p378) target = $region44
        $region43: #{tpu_custom_call.1} parent=27 // pred_region
          %382 = vsyncadd [#allocation5], 0
          %s384 = sshll.u32 [#allocation6], 4
          %s385 = int_to_ptr.vmem [resolvable:$true] %s384
          %s386 = sshll.u32 %s4, 4
          %s387 = int_to_ptr.hbm [resolvable:$true] %s386
          %389 = dma.vmem_to_hbm [thread:$0]  %s385, 16, %s387, [#allocation5]
        $region44: #{tpu_custom_call.1} parent=27 // pred_fallthru
          _
        // Predicated region
        $region45: #{tpu_custom_call.1} parent=27 // pred_check
          %p390 = pneg %p106
        $region46: #{tpu_custom_call.1} parent=27 // pred_check_branch
          %392 = sbr.rel (%p390) target = $region48
        $region47: #{tpu_custom_call.1} parent=27 // pred_region
          %394 = dma.done [#allocation5], 16
        $region48: #{tpu_custom_call.1} parent=27 // pred_fallthru
          _
        // Predicated region
        $region49: #{tpu_custom_call.1} parent=27 // pred_check
          %p395 = pneg %p127
        $region50: #{tpu_custom_call.1} parent=27 // pred_check_branch
          %397 = sbr.rel (%p395) target = $region52
        $region51: #{tpu_custom_call.1} parent=27 // pred_region
          %399 = dma.done [#allocation5], 16
        $region52: #{tpu_custom_call.1} parent=27 // pred_fallthru
          _
      $region28: #{tpu_custom_call.1} parent=5 // pred_fallthru
        _
      %p400 = scmp.le.s32.totalorder 2, %s15
      // Predicated region
      $region53: #{tpu_custom_call.1} parent=5 // pred_check
        %p401 = pneg %p400
      $region54: #{tpu_custom_call.1} parent=5 // pred_check_branch
        %403 = sbr.rel (%p401) target = $region56
      $region55: #{tpu_custom_call.1} parent=5 // pred_region
        %s404 = ssub.s32 %s15, 2
        // Predicated region
        $region57: #{tpu_custom_call.1} parent=55 // pred_check
          %p405 = pneg %p91
        $region58: #{tpu_custom_call.1} parent=55 // pred_check_branch
          %407 = sbr.rel (%p405) target = $region60
        $region59: #{tpu_custom_call.1} parent=55 // pred_region
          %s408 = sand.u32 %s76, 1
          %s409 = scalar_lea.sflag [#allocation3], %s408
          %s410 = sand.u32 %s76, 1
          %s411 = smul.addr %s410, 64
          %s412 = scalar_lea.vmem [#allocation2], %s411
          %414 = dma.done %s409, 1024
        $region60: #{tpu_custom_call.1} parent=55 // pred_fallthru
          _
      $region56: #{tpu_custom_call.1} parent=5 // pred_fallthru
        _
    $region6: #{tpu_custom_call.1} parent=1 // loop_footer
      %s19 = sadd.s32 1, %s15
    $region7: #{tpu_custom_call.1} parent=1 // loop_footer_branch
      %14 = sbr.rel target = $region3
    $region8: #{tpu_custom_call.1} parent=1 // loop_exit
      _
    %415 = vsyncpa [#allocation3], 1
    %s416 = scalar_lea.sflag [#allocation3], 1
    %417 = vsyncpa %s416, 1
    %418 = vsyncpa [#allocation5], 1

</llo_original>
